<compile_context>
chip_gen: v7x
topology: tpu7x:2x2x1
jax: 0.10.0
libtpu: 0.0.40
codegen_flags: <defaults>
</compile_context>

<pallas_src>
import functools

import jax
import jax.numpy as jnp
from jax.experimental import pallas as pl
from jax.experimental.pallas import tpu as pltpu


def _round_up(n, m):
    return (n + m - 1) // m * m


def _vmem_budget_bytes():
    # Generation-aware usable VMEM (~96 MiB on v5e/v6e, ~48 MiB on v7x).
    try:
        cap = pltpu.get_tpu_info().vmem_capacity_bytes
    except Exception:
        cap = 64 << 20   # conservative fallback (v7x per-core VMEM)
    return int(cap * 3 // 4)


def _num_batch_shards(batch):
    # v7x has 2 TensorCores/chip; the recurrence is serial in T but
    # embarrassingly parallel in batch.  On single-TC chips (v5e/v6e) splitting
    # batch only serializes more recurrence steps, so gate on the chip kind.
    try:
        kind = jax.devices()[0].device_kind.lower()
    except Exception:
        return 1
    multi_tc = ("v7" in kind) or ("7x" in kind)
    return 2 if (multi_tc and batch >= 32) else 1


def _pick_t_tile(T, b_tile, h_pad, o_pad, budget_bytes):
    # Largest time tile whose double-buffered bf16 xw tile fits what is left of
    # the VMEM budget after the resident weights / biases / output / h scratch.
    fixed = (2 * h_pad * h_pad * 2        # W_hh^T, double-buffered, bf16
             + 2 * h_pad * o_pad * 2      # W_fc^T, double-buffered, bf16
             + 2 * o_pad * 4              # b_fc,   double-buffered, f32
             + 2 * b_tile * o_pad * 4     # output block buffers, f32
             + b_tile * h_pad * 4)        # carried hidden-state scratch, f32
    per_step = 2 * b_tile * h_pad * 2     # double-buffered bf16 xw per timestep
    avail = max(budget_bytes - fixed, per_step)
    return max(1, min(T, avail // per_step))


def simple_rnn_kernel(xw_ref, whh_ref, wfc_ref, bfc_ref, out_ref, h_ref,
                      *, t_tile, seq_len):
    # xw_ref:  (t_tile, B_tile, H_pad) bf16   pre-computed x@W_ih^T + b_ih + b_hh
    # whh_ref: (H_pad, H_pad)          bf16   W_hh^T (pre-transposed, native MxK.KxN)
    # wfc_ref: (H_pad, O_pad)          bf16   W_fc^T (pre-transposed)
    # bfc_ref: (1, O_pad)              f32
    # out_ref: (B_tile, O_pad)         f32
    # h_ref:   (B_tile, H_pad)         f32    carried hidden state (VMEM scratch)
    t_blk = pl.program_id(1)

    @pl.when(t_blk == 0)
    def _():
        h_ref[...] = jnp.zeros_like(h_ref)          # h0 = 0 (matches torch.zeros)

    whh = whh_ref[...]                              # hoisted out of the time loop
    t_base = t_blk * t_tile
    partial_tail = (seq_len % t_tile) != 0          # static

    def step(t, h):
        # Serial recurrence: one (B_tile, H_pad) x (H_pad, H_pad) bf16 MXU matmul
        # with f32 accumulation + add + tanh per timestep.
        pre = xw_ref[t].astype(jnp.float32) + jnp.dot(
            h.astype(jnp.bfloat16), whh, preferred_element_type=jnp.float32)
        h_new = jnp.tanh(pre)
        if partial_tail:
            # Skip padded timesteps of the last (partial) tile: zero x does not
            # leave h unchanged, so padded steps must not mutate h.
            h_new = jnp.where(t_base + t < seq_len, h_new, h)
        return h_new

    h = jax.lax.fori_loop(0, t_tile, step, h_ref[...], unroll=min(8, t_tile))
    h_ref[...] = h

    @pl.when(t_blk == pl.num_programs(1) - 1)
    def _():
        # Final Linear on the last hidden state, written lane-dense once.
        out_ref[...] = (jnp.dot(h.astype(jnp.bfloat16), wfc_ref[...],
                                preferred_element_type=jnp.float32)
                        + bfc_ref[...])


@functools.partial(jax.jit, static_argnames=("t_tile",))
def simple_rnn_forward(x, w_ih, w_hh, b_ih, b_hh, w_fc, b_fc, *, t_tile=None):
    B, T, I = x.shape
    H = w_ih.shape[0]
    O = w_fc.shape[0]

    f32, bf16 = jnp.float32, jnp.bfloat16

    n_b = _num_batch_shards(B)
    b_pad = _round_up(B, 16 * n_b)          # 16-row shards: bf16 sublane friendly
    b_tile = b_pad // n_b
    h_pad = _round_up(H, 128)
    o_pad = _round_up(O, 128)

    vmem_limit = _vmem_budget_bytes()
    if t_tile is None:
        t_tile = _pick_t_tile(T, b_tile, h_pad, o_pad, vmem_limit - (2 << 20))
    n_t = pl.cdiv(T, t_tile)
    t_total = n_t * t_tile

    # Input projection (no serial dependency) in XLA at full MXU efficiency.
    xw = jnp.dot(x.astype(bf16), w_ih.T.astype(bf16), preferred_element_type=f32)
    xw = xw + (b_ih + b_hh).astype(f32)
    # Time-major, zero-padded, bf16 feed (halves DMA + VMEM for the xw tiles).
    xw = jnp.transpose(xw, (1, 0, 2)).astype(bf16)
    xw = jnp.pad(xw, ((0, t_total - T), (0, b_pad - B), (0, h_pad - H)))

    # Pre-transposed, zero-padded bf16 weights (padded hidden/output lanes see
    # zero pre-activation and stay exactly 0 through tanh / the final Linear).
    whh_t = jnp.pad(w_hh.T.astype(bf16), ((0, h_pad - H), (0, h_pad - H)))
    wfc_t = jnp.pad(w_fc.T.astype(bf16), ((0, h_pad - H), (0, o_pad - O)))
    bfc_p = jnp.pad(b_fc.astype(f32), (0, o_pad - O)).reshape(1, o_pad)

    kernel = functools.partial(simple_rnn_kernel, t_tile=t_tile, seq_len=T)

    # TODO(synk): single-buffer the grid-invariant weight BlockSpecs via
    # pipeline_mode=pl.Buffered(1) once confirmed supported for the top-level
    # grid pipeline; the double-buffer waste is accounted for in _pick_t_tile.
    out_p = pl.pallas_call(
        kernel,
        out_shape=jax.ShapeDtypeStruct((b_pad, o_pad), f32),
        grid=(n_b, n_t),
        in_specs=[
            pl.BlockSpec((t_tile, b_tile, h_pad), lambda b, t: (t, b, 0)),
            pl.BlockSpec((h_pad, h_pad), lambda b, t: (0, 0)),
            pl.BlockSpec((h_pad, o_pad), lambda b, t: (0, 0)),
            pl.BlockSpec((1, o_pad), lambda b, t: (0, 0)),
        ],
        out_specs=pl.BlockSpec((b_tile, o_pad), lambda b, t: (b, 0)),
        scratch_shapes=[
            pltpu.VMEM((b_tile, h_pad), f32),   # carried hidden state (f32)
        ],
        compiler_params=pltpu.CompilerParams(
            dimension_semantics=("parallel", "arbitrary"),  # batch ∥, time serial
            vmem_limit_bytes=int(vmem_limit)),
    )(xw, whh_t, wfc_t, bfc_p)

    return out_p[:B, :O]


def simple_rnn_reference(x, w_ih, w_hh, b_ih, b_hh, w_fc, b_fc):
    B, T, _ = x.shape
    H = w_ih.shape[0]
    h = jnp.zeros((B, H), jnp.float32)
    for t in range(T):
        h = jnp.tanh(x[:, t, :] @ w_ih.T + b_ih + h @ w_hh.T + b_hh)
    return h @ w_fc.T + b_fc


if __name__ == "__main__":
    # Module hyperparameters from the reference script.
    input_size = 1
    hidden_size = 2
    output_size = 1
    batch = 2
    seq = 8

    key = jax.random.PRNGKey(0)
    keys = jax.random.split(key, 7)
    bound = 1.0 / (hidden_size ** 0.5)   # PyTorch default init range

    x    = jax.random.normal(keys[0], (batch, seq, input_size), jnp.float32)
    w_ih = jax.random.uniform(keys[1], (hidden_size, input_size), jnp.float32, -bound, bound)
    w_hh = jax.random.uniform(keys[2], (hidden_size, hidden_size), jnp.float32, -bound, bound)
    b_ih = jax.random.uniform(keys[3], (hidden_size,), jnp.float32, -bound, bound)
    b_hh = jax.random.uniform(keys[4], (hidden_size,), jnp.float32, -bound, bound)
    w_fc = jax.random.uniform(keys[5], (output_size, hidden_size), jnp.float32, -bound, bound)
    b_fc = jax.random.uniform(keys[6], (output_size,), jnp.float32, -bound, bound)

    ref = simple_rnn_reference(x, w_ih, w_hh, b_ih, b_hh, w_fc, b_fc)

    # t_tile=3 exercises the carried-state path across grid steps plus the cdiv
    # remainder masking (seq=8 -> tiles of 3,3,2).  t_tile=None auto-picks the
    # largest VMEM-friendly tile (here the whole sequence, single grid step).
    out_a = jax.block_until_ready(
        simple_rnn_forward(x, w_ih, w_hh, b_ih, b_hh, w_fc, b_fc, t_tile=3))
    out_b = jax.block_until_ready(
        simple_rnn_forward(x, w_ih, w_hh, b_ih, b_hh, w_fc, b_fc))

    assert out_a.shape == (batch, output_size)
    assert out_b.shape == (batch, output_size)
    # bf16 MXU operands (f32 accumulation) drift slightly vs the f32 reference.
    assert jnp.allclose(out_a, ref, atol=5e-2, rtol=5e-2), (out_a, ref)
    assert jnp.allclose(out_b, ref, atol=5e-2, rtol=5e-2), (out_b, ref)
    assert jnp.allclose(out_a, out_b, atol=5e-3, rtol=5e-3), (out_a, out_b)

    print("KERNEL_OK")
</pallas_src>

<mosaic_0001>
module attributes {stable_mosaic.version = 11 : i64} {
  func.func @simple_rnn_kernel(%arg0: i32, %arg1: i32, %arg2: memref<3x16x128xbf16, #tpu.memory_space<vmem>>, %arg3: memref<128x128xbf16, #tpu.memory_space<vmem>>, %arg4: memref<128x128xbf16, #tpu.memory_space<vmem>>, %arg5: memref<1x128xf32, #tpu.memory_space<vmem>>, %arg6: memref<16x128xf32, #tpu.memory_space<vmem>>, %arg7: memref<16x128xf32, #tpu.memory_space<vmem>>) attributes {dimension_semantics = [#tpu.dimension_semantics<parallel>, #tpu.dimension_semantics<arbitrary>], iteration_bounds = array<i64: 1, 3>, scalar_prefetch = 0 : i64, scratch_operands = 1 : i64, tpu.core_type = #tpu.core_type<tc>, window_params = [{transform_indices = @transform_0, window_bounds = array<i64: 3, 16, 128>}, {pipeline_mode = #tpu.pipeline_mode<synchronous>, transform_indices = @transform_1, window_bounds = array<i64: 128, 128>}, {pipeline_mode = #tpu.pipeline_mode<synchronous>, transform_indices = @transform_2, window_bounds = array<i64: 128, 128>}, {pipeline_mode = #tpu.pipeline_mode<synchronous>, transform_indices = @transform_3, window_bounds = array<i64: 1, 128>}, {transform_indices = @transform_4, window_bounds = array<i64: 16, 128>}]} {
    %c0_i32 = arith.constant 0 : i32
    %0 = arith.cmpi eq, %arg1, %c0_i32 : i32
    %1 = arith.extui %0 : i1 to i32
    %c0_i32_0 = arith.constant 0 : i32
    %2 = arith.cmpi ne, %1, %c0_i32_0 : i32
    scf.if %2 {
      %cst_20 = arith.constant 0.000000e+00 : f32
      %43 = vector.broadcast %cst_20 : f32 to vector<16x128xf32>
      %c0_21 = arith.constant 0 : index
      %c0_22 = arith.constant 0 : index
      %44 = vector.load %arg7[%c0_21, %c0_22] : memref<16x128xf32, #tpu.memory_space<vmem>>, vector<16x128xf32>
      tpu.vector_store %arg7[%c0_21, %c0_22], %43 {strides = array<i32>} : memref<16x128xf32, #tpu.memory_space<vmem>>, vector<16x128xf32>,
    } else {
    }
    %c0 = arith.constant 0 : index
    %c0_1 = arith.constant 0 : index
    %3 = vector.load %arg3[%c0, %c0_1] : memref<128x128xbf16, #tpu.memory_space<vmem>>, vector<128x128xbf16>
    %c3_i32 = arith.constant 3 : i32
    %4 = arith.muli %arg1, %c3_i32 : i32
    %c0_2 = arith.constant 0 : index
    %c0_3 = arith.constant 0 : index
    %5 = vector.load %arg7[%c0_2, %c0_3] : memref<16x128xf32, #tpu.memory_space<vmem>>, vector<16x128xf32>
    %c0_i32_4 = arith.constant 0 : i32
    %6 = arith.index_cast %c0_i32_4 : i32 to index
    %c0_5 = arith.constant 0 : index
    %c0_6 = arith.constant 0 : index
    %7 = vector.load %arg2[%6, %c0_5, %c0_6] : memref<3x16x128xbf16, #tpu.memory_space<vmem>>, vector<1x16x128xbf16>
    %8 = vector.shape_cast %7 : vector<1x16x128xbf16> to vector<16x128xbf16>
    %9 = arith.extf %8 : vector<16x128xbf16> to vector<16x128xf32>
    %10 = arith.truncf %5 : vector<16x128xf32> to vector<16x128xbf16>
    %cst = arith.constant dense<0.000000e+00> : vector<16x128xf32>
    %11 = tpu.matmul %10, %3, %cst {dimension_numbers = #tpu.dot_dimension_numbers<[1], [0], [0], [1], [0, 0, 1, 1], [], []>} : vector<16x128xbf16>, vector<128x128xbf16>, vector<16x128xf32> -> vector<16x128xf32>
    %12 = arith.addf %9, %11 : vector<16x128xf32>
    %13 = math.tanh %12 : vector<16x128xf32>
    %14 = arith.addi %4, %c0_i32_4 : i32
    %c8_i32 = arith.constant 8 : i32
    %15 = arith.cmpi slt, %14, %c8_i32 : i32
    %16 = arith.select %15, %13, %5 : vector<16x128xf32>
    %c1_i32 = arith.constant 1 : i32
    %17 = arith.index_cast %c1_i32 : i32 to index
    %c0_7 = arith.constant 0 : index
    %c0_8 = arith.constant 0 : index
    %18 = vector.load %arg2[%17, %c0_7, %c0_8] : memref<3x16x128xbf16, #tpu.memory_space<vmem>>, vector<1x16x128xbf16>
    %19 = vector.shape_cast %18 : vector<1x16x128xbf16> to vector<16x128xbf16>
    %20 = arith.extf %19 : vector<16x128xbf16> to vector<16x128xf32>
    %21 = arith.truncf %16 : vector<16x128xf32> to vector<16x128xbf16>
    %cst_9 = arith.constant dense<0.000000e+00> : vector<16x128xf32>
    %22 = tpu.matmul %21, %3, %cst_9 {dimension_numbers = #tpu.dot_dimension_numbers<[1], [0], [0], [1], [0, 0, 1, 1], [], []>} : vector<16x128xbf16>, vector<128x128xbf16>, vector<16x128xf32> -> vector<16x128xf32>
    %23 = arith.addf %20, %22 : vector<16x128xf32>
    %24 = math.tanh %23 : vector<16x128xf32>
    %25 = arith.addi %4, %c1_i32 : i32
    %c8_i32_10 = arith.constant 8 : i32
    %26 = arith.cmpi slt, %25, %c8_i32_10 : i32
    %27 = arith.select %26, %24, %16 : vector<16x128xf32>
    %c2_i32 = arith.constant 2 : i32
    %28 = arith.index_cast %c2_i32 : i32 to index
    %c0_11 = arith.constant 0 : index
    %c0_12 = arith.constant 0 : index
    %29 = vector.load %arg2[%28, %c0_11, %c0_12] : memref<3x16x128xbf16, #tpu.memory_space<vmem>>, vector<1x16x128xbf16>
    %30 = vector.shape_cast %29 : vector<1x16x128xbf16> to vector<16x128xbf16>
    %31 = arith.extf %30 : vector<16x128xbf16> to vector<16x128xf32>
    %32 = arith.truncf %27 : vector<16x128xf32> to vector<16x128xbf16>
    %cst_13 = arith.constant dense<0.000000e+00> : vector<16x128xf32>
    %33 = tpu.matmul %32, %3, %cst_13 {dimension_numbers = #tpu.dot_dimension_numbers<[1], [0], [0], [1], [0, 0, 1, 1], [], []>} : vector<16x128xbf16>, vector<128x128xbf16>, vector<16x128xf32> -> vector<16x128xf32>
    %34 = arith.addf %31, %33 : vector<16x128xf32>
    %35 = math.tanh %34 : vector<16x128xf32>
    %36 = arith.addi %4, %c2_i32 : i32
    %c8_i32_14 = arith.constant 8 : i32
    %37 = arith.cmpi slt, %36, %c8_i32_14 : i32
    %38 = arith.select %37, %35, %27 : vector<16x128xf32>
    %c3_i32_15 = arith.constant 3 : i32
    %c0_16 = arith.constant 0 : index
    %c0_17 = arith.constant 0 : index
    %39 = vector.load %arg7[%c0_16, %c0_17] : memref<16x128xf32, #tpu.memory_space<vmem>>, vector<16x128xf32>
    tpu.vector_store %arg7[%c0_16, %c0_17], %38 {strides = array<i32>} : memref<16x128xf32, #tpu.memory_space<vmem>>, vector<16x128xf32>,
    %c2_i32_18 = arith.constant 2 : i32
    %40 = arith.cmpi eq, %arg1, %c2_i32_18 : i32
    %41 = arith.extui %40 : i1 to i32
    %c0_i32_19 = arith.constant 0 : i32
    %42 = arith.cmpi ne, %41, %c0_i32_19 : i32
    scf.if %42 {
      %43 = arith.truncf %38 : vector<16x128xf32> to vector<16x128xbf16>
      %c0_20 = arith.constant 0 : index
      %c0_21 = arith.constant 0 : index
      %44 = vector.load %arg4[%c0_20, %c0_21] : memref<128x128xbf16, #tpu.memory_space<vmem>>, vector<128x128xbf16>
      %cst_22 = arith.constant dense<0.000000e+00> : vector<16x128xf32>
      %45 = tpu.matmul %43, %44, %cst_22 {dimension_numbers = #tpu.dot_dimension_numbers<[1], [0], [0], [1], [0, 0, 1, 1], [], []>} : vector<16x128xbf16>, vector<128x128xbf16>, vector<16x128xf32> -> vector<16x128xf32>
      %c0_23 = arith.constant 0 : index
      %c0_24 = arith.constant 0 : index
      %46 = vector.load %arg5[%c0_23, %c0_24] : memref<1x128xf32, #tpu.memory_space<vmem>>, vector<1x128xf32>
      %47 = vector.broadcast %46 : vector<1x128xf32> to vector<16x128xf32>
      %48 = arith.addf %45, %47 : vector<16x128xf32>
      %c0_25 = arith.constant 0 : index
      %c0_26 = arith.constant 0 : index
      %49 = vector.load %arg6[%c0_25, %c0_26] : memref<16x128xf32, #tpu.memory_space<vmem>>, vector<16x128xf32>
      tpu.vector_store %arg6[%c0_25, %c0_26], %48 {strides = array<i32>} : memref<16x128xf32, #tpu.memory_space<vmem>>, vector<16x128xf32>,
    } else {
    }
    return
  }
  func.func @transform_0(%arg0: i32, %arg1: i32) -> (i32, i32, i32) {
    %c0_i32 = arith.constant 0 : i32
    %c0_i32_0 = arith.constant 0 : i32
    return %arg1, %arg0, %c0_i32 : i32, i32, i32
  }
  func.func @transform_1(%arg0: i32, %arg1: i32) -> (i32, i32) {
    %c0_i32 = arith.constant 0 : i32
    %c0_i32_0 = arith.constant 0 : i32
    %c0_i32_1 = arith.constant 0 : i32
    return %c0_i32, %c0_i32_0 : i32, i32
  }
  func.func @transform_2(%arg0: i32, %arg1: i32) -> (i32, i32) {
    %c0_i32 = arith.constant 0 : i32
    %c0_i32_0 = arith.constant 0 : i32
    %c0_i32_1 = arith.constant 0 : i32
    return %c0_i32, %c0_i32_0 : i32, i32
  }
  func.func @transform_3(%arg0: i32, %arg1: i32) -> (i32, i32) {
    %c0_i32 = arith.constant 0 : i32
    %c0_i32_0 = arith.constant 0 : i32
    %c0_i32_1 = arith.constant 0 : i32
    return %c0_i32, %c0_i32_0 : i32, i32
  }
  func.func @transform_4(%arg0: i32, %arg1: i32) -> (i32, i32) {
    %c0_i32 = arith.constant 0 : i32
    %c0_i32_0 = arith.constant 0 : i32
    return %arg0, %c0_i32 : i32, i32
  }
}

</mosaic_0001>

<llo_original>
// kernel: simple_rnn_forward.1
$region0: #{simple_rnn_forward.1}
  #allocation0 [shape = 'u32[]', space=smem, size = 0x4, offset = 0x4, fixed_abs, tag = 'smem constant byte address 0x4 - core index']
  #allocation1 [shape = 'u32[144,128]{1,0:T(1,128)}', space=vmem, size = 0x12000, scoped, tag = 'internal scratch']
  #allocation2 [shape = 'f32[16,128]{1,0:T(8,128)}', space=vmem, size = 0x2000, scoped, tag = 'scratch operand']
  %s0 = inlined_call_operand.vmem [shape: bf16[9,16,128], index: 0, kind: input, shape index: {}]
  %s1 = inlined_call_operand.vmem [shape: bf16[128,128], index: 1, kind: input, shape index: {}]
  %s2 = inlined_call_operand.vmem [shape: bf16[128,128], index: 2, kind: input, shape index: {}]
  %s3 = inlined_call_operand.vmem [shape: f32[1,128], index: 3, kind: input, shape index: {}]
  %s4 = inlined_call_operand.vmem [shape: f32[16,128], index: 4, kind: output, shape index: {}]
  %s5 = sld [smem:[#allocation0]]
  $region57: #{simple_rnn_forward.1} parent=0
    _
  %s7 = ssub.s32 1, %s5
  %s8 = scalar_select 0, %s7, %s5
  loop: start=0, step=1, limit=5
  $region2: #{simple_rnn_forward.1} parent=0 // loop_pre_header
    _
  $region3: #{simple_rnn_forward.1} parent=0 // loop_header
    %s10 = sphi 0, %s14
    %p11 = scmp.ge.s32.totalorder %s10, 5
    %s17 = sphi 0, %s29
    %s18 = sphi 0, %s25
    %s19 = sphi 0, %s17
    %s20 = sphi 0, %s18
    %s21 = sphi 0, %s19
    %s22 = sphi 0, %s20
    %s34 = sphi 0, %s36
    %s37 = sphi 0, %s34
    %s38 = sphi 0, %s37
    %s54 = sphi 0, %s38
    %s58 = sphi 0, %s58
    %s60 = sphi 0, %s58
    %s61 = sphi 0, %s60
    %s75 = sphi 0, %s61
    %s79 = sphi 0, %s79
    %s81 = sphi 0, %s79
    %s82 = sphi 0, %s81
    %s96 = sphi 0, %s82
    %s100 = sphi 0, %s100
    %s102 = sphi 0, %s100
    %s103 = sphi 0, %s102
    %s117 = sphi 0, %s103
    %s123 = sphi 0, %s125
    %s126 = sphi 0, %s123
    %s127 = sphi 0, %s126
    %s143 = sphi 0, %s127
  $region4: #{simple_rnn_forward.1} parent=0 // loop_header_branch
    %13 = sbr.rel (%p11) target = $region8
  $region5: #{simple_rnn_forward.1} parent=0 // loop_body
    %s15 = ssub.s32 %s10, 1
    %s16 = ssub.s32 %s10, 2
    %s23 = sadd.s32 1, %s18
    %p24 = scmp.ge.s32.totalorder %s23, 3
    %s25 = scalar_select %p24, 0, %s23
    %s26 = sadd.s32 1, %s17
    %s27 = scalar_select %p24, %s26, %s17
    %p28 = scmp.ge.s32.totalorder %s27, 1
    %s29 = scalar_select %p28, 0, %s27
    %s30 = ssub.s32 %s18, %s25
    %s31 = ssub.s32 %s17, %s29
    %s32 = sor.u32 %s30, %s31
    %p33 = scmp.eq.s32.totalorder %s32, 0
    %s35 = sadd.s32 %s34, 1
    %s36 = scalar_select %p33, %s34, %s35
    %p39 = pneg %p33
    %p40 = scmp.eq.s32.totalorder %s10, 2
    %p41 = por %p39, %p40
    %p42 = scmp.ne.s32.totalorder %s34, %s37
    %p43 = scmp.eq.s32.totalorder %s10, 0
    %p44 = por %p42, %p43
    %p45 = scmp.ne.s32.totalorder %s34, %s37
    %p46 = scmp.eq.s32.totalorder %s15, 2
    %p47 = por %p45, %p46
    %p48 = scmp.ne.s32.totalorder %s37, %s38
    %p49 = scmp.eq.s32.totalorder %s15, 0
    %p50 = por %p48, %p49
    %p51 = scmp.ne.s32.totalorder %s37, %s38
    %p52 = scmp.eq.s32.totalorder %s16, 2
    %p53 = por %p51, %p52
    %p55 = scmp.ne.s32.totalorder %s38, %s54
    %p56 = scmp.eq.s32.totalorder %s16, 0
    %p57 = por %p55, %p56
    %s59 = sadd.s32 %s58, 1
    %p62 = scmp.eq.s32.totalorder %s10, 2
    %p63 = scmp.ne.s32.totalorder %s58, %s60
    %p64 = scmp.eq.s32.totalorder %s10, 0
    %p65 = por %p63, %p64
    %p66 = scmp.ne.s32.totalorder %s58, %s60
    %p67 = scmp.eq.s32.totalorder %s15, 2
    %p68 = por %p66, %p67
    %p69 = scmp.ne.s32.totalorder %s60, %s61
    %p70 = scmp.eq.s32.totalorder %s15, 0
    %p71 = por %p69, %p70
    %p72 = scmp.ne.s32.totalorder %s60, %s61
    %p73 = scmp.eq.s32.totalorder %s16, 2
    %p74 = por %p72, %p73
    %p76 = scmp.ne.s32.totalorder %s61, %s75
    %p77 = scmp.eq.s32.totalorder %s16, 0
    %p78 = por %p76, %p77
    %s80 = sadd.s32 %s79, 1
    %p83 = scmp.eq.s32.totalorder %s10, 2
    %p84 = scmp.ne.s32.totalorder %s79, %s81
    %p85 = scmp.eq.s32.totalorder %s10, 0
    %p86 = por %p84, %p85
    %p87 = scmp.ne.s32.totalorder %s79, %s81
    %p88 = scmp.eq.s32.totalorder %s15, 2
    %p89 = por %p87, %p88
    %p90 = scmp.ne.s32.totalorder %s81, %s82
    %p91 = scmp.eq.s32.totalorder %s15, 0
    %p92 = por %p90, %p91
    %p93 = scmp.ne.s32.totalorder %s81, %s82
    %p94 = scmp.eq.s32.totalorder %s16, 2
    %p95 = por %p93, %p94
    %p97 = scmp.ne.s32.totalorder %s82, %s96
    %p98 = scmp.eq.s32.totalorder %s16, 0
    %p99 = por %p97, %p98
    %s101 = sadd.s32 %s100, 1
    %p104 = scmp.eq.s32.totalorder %s10, 2
    %p105 = scmp.ne.s32.totalorder %s100, %s102
    %p106 = scmp.eq.s32.totalorder %s10, 0
    %p107 = por %p105, %p106
    %p108 = scmp.ne.s32.totalorder %s100, %s102
    %p109 = scmp.eq.s32.totalorder %s15, 2
    %p110 = por %p108, %p109
    %p111 = scmp.ne.s32.totalorder %s102, %s103
    %p112 = scmp.eq.s32.totalorder %s15, 0
    %p113 = por %p111, %p112
    %p114 = scmp.ne.s32.totalorder %s102, %s103
    %p115 = scmp.eq.s32.totalorder %s16, 2
    %p116 = por %p114, %p115
    %p118 = scmp.ne.s32.totalorder %s103, %s117
    %p119 = scmp.eq.s32.totalorder %s16, 0
    %p120 = por %p118, %p119
    %s121 = ssub.s32 %s17, %s29
    %p122 = scmp.eq.s32.totalorder %s121, 0
    %s124 = sadd.s32 %s123, 1
    %s125 = scalar_select %p122, %s123, %s124
    %p128 = pneg %p122
    %p129 = scmp.eq.s32.totalorder %s10, 2
    %p130 = por %p128, %p129
    %p131 = scmp.ne.s32.totalorder %s123, %s126
    %p132 = scmp.eq.s32.totalorder %s10, 0
    %p133 = por %p131, %p132
    %p134 = scmp.ne.s32.totalorder %s123, %s126
    %p135 = scmp.eq.s32.totalorder %s15, 2
    %p136 = por %p134, %p135
    %p137 = scmp.ne.s32.totalorder %s126, %s127
    %p138 = scmp.eq.s32.totalorder %s15, 0
    %p139 = por %p137, %p138
    %p140 = scmp.ne.s32.totalorder %s126, %s127
    %p141 = scmp.eq.s32.totalorder %s16, 2
    %p142 = por %p140, %p141
    %p144 = scmp.ne.s32.totalorder %s127, %s143
    %p145 = scmp.eq.s32.totalorder %s16, 0
    %p146 = por %p144, %p145
    %p147 = scmp.le.s32.totalorder 1, %s10
    %p148 = scmp.lt.s32.totalorder %s10, 4
    %p149 = pnand %p147, %p148
    %p150 = pneg %p149
    // Predicated region
    $region9: #{simple_rnn_forward.1} parent=5 // pred_check
      _
    $region10: #{simple_rnn_forward.1} parent=5 // pred_check_branch
      %152 = sbr.rel (%p149) target = $region12
    $region11: #{simple_rnn_forward.1} parent=5 // pred_region
      %s153 = ssub.s32 %s10, 1
      // Predicated region
      $region13: #{simple_rnn_forward.1} parent=11 // pred_check
        %p154 = pneg %p71
      $region14: #{simple_rnn_forward.1} parent=11 // pred_check_branch
        %156 = sbr.rel (%p154) target = $region16
      $region15: #{simple_rnn_forward.1} parent=11 // pred_region
        _
      $region16: #{simple_rnn_forward.1} parent=11 // pred_fallthru
        _
      // Predicated region
      $region17: #{simple_rnn_forward.1} parent=11 // pred_check
        %p157 = pneg %p92
      $region18: #{simple_rnn_forward.1} parent=11 // pred_check_branch
        %159 = sbr.rel (%p157) target = $region20
      $region19: #{simple_rnn_forward.1} parent=11 // pred_region
        _
      $region20: #{simple_rnn_forward.1} parent=11 // pred_fallthru
        _
      // Predicated region
      $region21: #{simple_rnn_forward.1} parent=11 // pred_check
        %p160 = pneg %p113
      $region22: #{simple_rnn_forward.1} parent=11 // pred_check_branch
        %162 = sbr.rel (%p160) target = $region24
      $region23: #{simple_rnn_forward.1} parent=11 // pred_region
        _
      $region24: #{simple_rnn_forward.1} parent=11 // pred_fallthru
        _
    $region12: #{simple_rnn_forward.1} parent=5 // pred_fallthru
      _
    %p163 = scmp.lt.s32.totalorder %s10, 3
    // Predicated region
    $region25: #{simple_rnn_forward.1} parent=5 // pred_check
      %p164 = pneg %p163
    $region26: #{simple_rnn_forward.1} parent=5 // pred_check_branch
      %166 = sbr.rel (%p164) target = $region28
    $region27: #{simple_rnn_forward.1} parent=5 // pred_region
      // Predicated region
      $region29: #{simple_rnn_forward.1} parent=27 // pred_check
        %p167 = pneg %p44
      $region30: #{simple_rnn_forward.1} parent=27 // pred_check_branch
        %169 = sbr.rel (%p167) target = $region32
      $region31: #{simple_rnn_forward.1} parent=27 // pred_region
        %s170 = smul.u32 3, %s18
        %s171 = smul.u32 2, %s17
        %p172 = scmp.lt.s32.totalorder %s170, 8
        %s173 = scalar_select %p172, %s170, 8
        %p174 = scmp.lt.s32.totalorder %s171, 1
        %s175 = scalar_select %p174, %s171, 1
        %s176 = smul.addr %s173, 2
        %s177 = sadd.s32 %s175, %s176
        %s178 = smul.addr %s177, 4
        %s179 = scalar_lea.vmem %s0, %s178
        %s180 = smul.u32 3, %s18
        %s181 = smul.u32 2, %s17
      $region32: #{simple_rnn_forward.1} parent=27 // pred_fallthru
        _
    $region28: #{simple_rnn_forward.1} parent=5 // pred_fallthru
      _
    %p182 = scmp.le.s32.totalorder 1, %s10
    %p183 = scmp.lt.s32.totalorder %s10, 4
    %p184 = pnand %p182, %p183
    %p185 = pneg %p184
    // Predicated region
    $region33: #{simple_rnn_forward.1} parent=5 // pred_check
      _
    $region34: #{simple_rnn_forward.1} parent=5 // pred_check_branch
      %187 = sbr.rel (%p184) target = $region36
    $region35: #{simple_rnn_forward.1} parent=5 // pred_region
      %s188 = ssub.s32 %s10, 1
      %s189 = smul.u32 3, %s20
      %s190 = smul.u32 2, %s19
      %p191 = scmp.lt.s32.totalorder %s189, 8
      %s192 = scalar_select %p191, %s189, 8
      %p193 = scmp.lt.s32.totalorder %s190, 1
      %s194 = scalar_select %p193, %s190, 1
      %s195 = smul.addr %s192, 2
      %s196 = sadd.s32 %s194, %s195
      %s197 = smul.addr %s196, 4
      %s198 = scalar_lea.vmem %s0, %s197
      %p199 = pneg %p50
      %p200 = pneg %p47
      %p201 = pneg %p71
      %p202 = pneg %p68
      %p203 = pneg %p92
      %p204 = pneg %p89
      %p205 = pneg %p113
      %p206 = pneg %p110
      %p207 = pneg %p139
      %p208 = pneg %p136
      %s209 = smul.u32 2, %s19
      %p210 = scmp.lt.s32.totalorder %s209, 1
      %s211 = scalar_select %p210, %s209, 1
      %s212 = smul.addr %s211, 8
      %s213 = scalar_lea.vmem %s4, %s212
      %s214 = smul.u32 3, %s20
      %s215 = smul.u32 2, %s19
      %p216 = scmp.lt.s32.totalorder %s214, 8
      %s217 = scalar_select %p216, %s214, 8
      %p218 = scmp.lt.s32.totalorder %s215, 1
      %s219 = scalar_select %p218, %s215, 1
      %s220 = smul.addr %s217, 2
      %s221 = sadd.s32 %s219, %s220
      %s222 = smul.addr %s221, 4
      %s223 = scalar_lea.vmem %s0, %s222
      %s224 = smul.u32 3, %s20
      %s225 = smul.u32 2, %s19
      %s226 = smul.u32 2, %s19
      %p227 = scmp.lt.s32.totalorder %s226, 1
      %s228 = scalar_select %p227, %s226, 1
      %s229 = smul.addr %s228, 8
      %s230 = scalar_lea.vmem %s4, %s229
      %s231 = smul.u32 2, %s19
      %p233 = scmp.eq.s32.totalorder %s20, 0
      // Predicated region
      $region37: #{simple_rnn_forward.1} parent=35 // pred_check
        %p234 = pneg %p233
      $region38: #{simple_rnn_forward.1} parent=35 // pred_check_branch
        %236 = sbr.rel (%p234) target = $region40
      $region39: #{simple_rnn_forward.1} parent=35 // pred_region
        %237 = vst [vmem:[#allocation2] sm:$0xff] 0.0
        %238 = vst [vmem:[#allocation2 + $0x8] sm:$0xff] 0.0
      $region40: #{simple_rnn_forward.1} parent=35 // pred_fallthru
        _
      %v239 = vld [vmem:[%s1] sm:$0xf]
      %v240 = vld [vmem:[%s1 + $0x4] sm:$0xf]
      %v241 = vld [vmem:[%s1 + $0x8] sm:$0xf]
      %v242 = vld [vmem:[%s1 + $0xc] sm:$0xf]
      %v243 = vld [vmem:[%s1 + $0x10] sm:$0xf]
      %v244 = vld [vmem:[%s1 + $0x14] sm:$0xf]
      %v245 = vld [vmem:[%s1 + $0x18] sm:$0xf]
      %v246 = vld [vmem:[%s1 + $0x1c] sm:$0xf]
      %v247 = vld [vmem:[%s1 + $0x20] sm:$0xf]
      %v248 = vld [vmem:[%s1 + $0x24] sm:$0xf]
      %v249 = vld [vmem:[%s1 + $0x28] sm:$0xf]
      %v250 = vld [vmem:[%s1 + $0x2c] sm:$0xf]
      %v251 = vld [vmem:[%s1 + $0x30] sm:$0xf]
      %v252 = vld [vmem:[%s1 + $0x34] sm:$0xf]
      %v253 = vld [vmem:[%s1 + $0x38] sm:$0xf]
      %v254 = vld [vmem:[%s1 + $0x3c] sm:$0xf]
      %s255 = smul.u32 %s20, 3
      %v256 = vld [vmem:[#allocation2] sm:$0xff]
      %v257 = vld [vmem:[#allocation2 + $0x8] sm:$0xff]
      %v258 = vld [vmem:[%s223] sm:$0xf]
      %v259 = vld [vmem:[%s223 + $0x4] sm:$0xf]
      %v260 = vunpack.c.l.bf16 %v258
      %v261 = vunpack.c.l.bf16 %v259
      %v262 = vpack.c.bf16 %v257, %v256
      %v279 = vunpack.c.l.b16 %v239
      %v280 = vunpack.c.l.b16 %v240
      %v281 = vunpack.c.l.b16 %v241
      %v282 = vunpack.c.l.b16 %v242
      %v283 = vunpack.c.l.b16 %v243
      %v284 = vunpack.c.l.b16 %v244
      %v285 = vunpack.c.l.b16 %v245
      %v286 = vunpack.c.l.b16 %v246
      %v287 = vunpack.c.l.b16 %v247
      %v288 = vunpack.c.l.b16 %v248
      %v289 = vunpack.c.l.b16 %v249
      %v290 = vunpack.c.l.b16 %v250
      %v291 = vunpack.c.l.b16 %v251
      %v292 = vunpack.c.l.b16 %v252
      %v293 = vunpack.c.l.b16 %v253
      %v294 = vunpack.c.l.b16 %v254
      %v295 = vpack.c.b16 %v280, %v279
      %v296 = vpack.c.b16 %v282, %v281
      %v297 = vpack.c.b16 %v284, %v283
      %v298 = vpack.c.b16 %v286, %v285
      %v299 = vpack.c.b16 %v288, %v287
      %v300 = vpack.c.b16 %v290, %v289
      %v301 = vpack.c.b16 %v292, %v291
      %v302 = vpack.c.b16 %v294, %v293
      %311 = vmatprep.subr.bf16.mxu0 0
      %312 = vmatpush1.bf16.msra.mxu0 %v295
      %313 = vmatprep.subr.bf16.mxu0 0
      %314 = vmatpush1.bf16.msra.mxu0 %v296
      %315 = vmatprep.subr.bf16.mxu0 0
      %316 = vmatpush1.bf16.msra.mxu0 %v297
      %317 = vmatprep.subr.bf16.mxu0 0
      %318 = vmatpush1.bf16.msra.mxu0 %v298
      %319 = vmatprep.subr.bf16.mxu0 0
      %320 = vmatpush1.bf16.msra.mxu0 %v299
      %321 = vmatprep.subr.bf16.mxu0 0
      %322 = vmatpush1.bf16.msra.mxu0 %v300
      %323 = vmatprep.subr.bf16.mxu0 0
      %324 = vmatpush1.bf16.msra.mxu0 %v301
      %325 = vmatprep.subr.bf16.mxu0 0
      %326 = vmatpush1.bf16.msra.mxu0 %v302
      %327 = vmatprep.subr.bf16.mxu0 0
      %328 = vmatpush1.bf16.msra.mxu0 0
      %329 = vmatprep.subr.bf16.mxu0 0
      %330 = vmatpush1.bf16.msra.mxu0 0
      %331 = vmatprep.subr.bf16.mxu0 0
      %332 = vmatpush1.bf16.msra.mxu0 0
      %333 = vmatprep.subr.bf16.mxu0 0
      %334 = vmatpush1.bf16.msra.mxu0 0
      %335 = vmatprep.subr.bf16.mxu0 0
      %336 = vmatpush1.bf16.msra.mxu0 0
      %337 = vmatprep.subr.bf16.mxu0 0
      %338 = vmatpush1.bf16.msra.mxu0 0
      %339 = vmatprep.subr.bf16.mxu0 0
      %340 = vmatpush1.bf16.msra.mxu0 0
      %341 = vmatprep.subr.bf16.mxu0 0
      %342 = vmatpush1.bf16.msra.mxu0 0
      %343 = vmatprep.mubr.bf16.mxu0 0
      %344 = vmatmul.mubr.bf16.gmra.mrb[0].mxu0 %v262
      %v345 = vpop.f32.mrb[0].mxu0
      %v346 = vadd.f32 0.0, %v345
      %v347 = vpop.f32.mrb[0].mxu0
      %v348 = vpop.f32.mrb[0].mxu0
      %v349 = vadd.f32 0.0, %v348
      %v350 = vpop.f32.mrb[0].mxu0
      %351 = vdwg.mxu0
      %v352 = vadd.f32 %v260, %v346
      %v353 = vadd.f32 %v261, %v349
      %v354 = vtanh.pop %v352
      %v355 = vtanh.pop %v353
      %p356 = scmp.lt.s32.totalorder %s255, 8
      %s357 = scalar_select %p356, 1, 0
      %v358 = vstv %s357
      %vm359 = vcmp.eq.s32.totalorder %v358, 1
      %v360 = vsel %vm359, %v354, %v256
      %v361 = vsel %vm359, %v355, %v257
      %s362 = scalar_lea.vmem %s223, 8
      %v363 = vld [vmem:[%s362] sm:$0xf]
      %v364 = vld [vmem:[%s362 + $0x4] sm:$0xf]
      %v365 = vunpack.c.l.bf16 %v363
      %v366 = vunpack.c.l.bf16 %v364
      %v367 = vpack.c.bf16 %v361, %v360
      %368 = vmatprep.subr.bf16.mxu0 0
      %369 = vmatpush1.bf16.msra.mxu0 %v295
      %370 = vmatprep.subr.bf16.mxu0 0
      %371 = vmatpush1.bf16.msra.mxu0 %v296
      %372 = vmatprep.subr.bf16.mxu0 0
      %373 = vmatpush1.bf16.msra.mxu0 %v297
      %374 = vmatprep.subr.bf16.mxu0 0
      %375 = vmatpush1.bf16.msra.mxu0 %v298
      %376 = vmatprep.subr.bf16.mxu0 0
      %377 = vmatpush1.bf16.msra.mxu0 %v299
      %378 = vmatprep.subr.bf16.mxu0 0
      %379 = vmatpush1.bf16.msra.mxu0 %v300
      %380 = vmatprep.subr.bf16.mxu0 0
      %381 = vmatpush1.bf16.msra.mxu0 %v301
      %382 = vmatprep.subr.bf16.mxu0 0
      %383 = vmatpush1.bf16.msra.mxu0 %v302
      %384 = vmatprep.subr.bf16.mxu0 0
      %385 = vmatpush1.bf16.msra.mxu0 0
      %386 = vmatprep.subr.bf16.mxu0 0
      %387 = vmatpush1.bf16.msra.mxu0 0
      %388 = vmatprep.subr.bf16.mxu0 0
      %389 = vmatpush1.bf16.msra.mxu0 0
      %390 = vmatprep.subr.bf16.mxu0 0
      %391 = vmatpush1.bf16.msra.mxu0 0
      %392 = vmatprep.subr.bf16.mxu0 0
      %393 = vmatpush1.bf16.msra.mxu0 0
      %394 = vmatprep.subr.bf16.mxu0 0
      %395 = vmatpush1.bf16.msra.mxu0 0
      %396 = vmatprep.subr.bf16.mxu0 0
      %397 = vmatpush1.bf16.msra.mxu0 0
      %398 = vmatprep.subr.bf16.mxu0 0
      %399 = vmatpush1.bf16.msra.mxu0 0
      %400 = vmatprep.mubr.bf16.mxu0 0
      %401 = vmatmul.mubr.bf16.gmra.mrb[0].mxu0 %v367
      %v402 = vpop.f32.mrb[0].mxu0
      %v403 = vadd.f32 0.0, %v402
      %v404 = vpop.f32.mrb[0].mxu0
      %v405 = vpop.f32.mrb[0].mxu0
      %v406 = vadd.f32 0.0, %v405
      %v407 = vpop.f32.mrb[0].mxu0
      %408 = vdwg.mxu0
      %v409 = vadd.f32 %v365, %v403
      %v410 = vadd.f32 %v366, %v406
      %v411 = vtanh.pop %v409
      %v412 = vtanh.pop %v410
      %s413 = sadd.s32 %s255, 1
      %p414 = scmp.lt.s32.totalorder %s413, 8
      %s415 = scalar_select %p414, 1, 0
      %v416 = vstv %s415
      %vm417 = vcmp.eq.s32.totalorder %v416, 1
      %v418 = vsel %vm417, %v411, %v360
      %v419 = vsel %vm417, %v412, %v361
      %s420 = scalar_lea.vmem %s223, 16
      %v421 = vld [vmem:[%s420] sm:$0xf]
      %v422 = vld [vmem:[%s420 + $0x4] sm:$0xf]
      %v423 = vunpack.c.l.bf16 %v421
      %v424 = vunpack.c.l.bf16 %v422
      %v425 = vpack.c.bf16 %v419, %v418
      %426 = vmatprep.subr.bf16.mxu0 0
      %427 = vmatpush1.bf16.msra.mxu0 %v295
      %428 = vmatprep.subr.bf16.mxu0 0
      %429 = vmatpush1.bf16.msra.mxu0 %v296
      %430 = vmatprep.subr.bf16.mxu0 0
      %431 = vmatpush1.bf16.msra.mxu0 %v297
      %432 = vmatprep.subr.bf16.mxu0 0
      %433 = vmatpush1.bf16.msra.mxu0 %v298
      %434 = vmatprep.subr.bf16.mxu0 0
      %435 = vmatpush1.bf16.msra.mxu0 %v299
      %436 = vmatprep.subr.bf16.mxu0 0
      %437 = vmatpush1.bf16.msra.mxu0 %v300
      %438 = vmatprep.subr.bf16.mxu0 0
      %439 = vmatpush1.bf16.msra.mxu0 %v301
      %440 = vmatprep.subr.bf16.mxu0 0
      %441 = vmatpush1.bf16.msra.mxu0 %v302
      %442 = vmatprep.subr.bf16.mxu0 0
      %443 = vmatpush1.bf16.msra.mxu0 0
      %444 = vmatprep.subr.bf16.mxu0 0
      %445 = vmatpush1.bf16.msra.mxu0 0
      %446 = vmatprep.subr.bf16.mxu0 0
      %447 = vmatpush1.bf16.msra.mxu0 0
      %448 = vmatprep.subr.bf16.mxu0 0
      %449 = vmatpush1.bf16.msra.mxu0 0
      %450 = vmatprep.subr.bf16.mxu0 0
      %451 = vmatpush1.bf16.msra.mxu0 0
      %452 = vmatprep.subr.bf16.mxu0 0
      %453 = vmatpush1.bf16.msra.mxu0 0
      %454 = vmatprep.subr.bf16.mxu0 0
      %455 = vmatpush1.bf16.msra.mxu0 0
      %456 = vmatprep.subr.bf16.mxu0 0
      %457 = vmatpush1.bf16.msra.mxu0 0
      %458 = vmatprep.mubr.bf16.mxu0 0
      %459 = vmatmul.mubr.bf16.gmra.mrb[0].mxu0 %v425
      %v460 = vpop.f32.mrb[0].mxu0
      %v461 = vadd.f32 0.0, %v460
      %v462 = vpop.f32.mrb[0].mxu0
      %v463 = vpop.f32.mrb[0].mxu0
      %v464 = vadd.f32 0.0, %v463
      %v465 = vpop.f32.mrb[0].mxu0
      %466 = vdwg.mxu0
      %v467 = vadd.f32 %v423, %v461
      %v468 = vadd.f32 %v424, %v464
      %v469 = vtanh.pop %v467
      %v470 = vtanh.pop %v468
      %s471 = sadd.s32 %s255, 2
      %p472 = scmp.lt.s32.totalorder %s471, 8
      %s473 = scalar_select %p472, 1, 0
      %v474 = vstv %s473
      %vm475 = vcmp.eq.s32.totalorder %v474, 1
      %v476 = vsel %vm475, %v469, %v418
      %v477 = vsel %vm475, %v470, %v419
      %478 = vst [vmem:[#allocation2] sm:$0xff] %v476
      %479 = vst [vmem:[#allocation2 + $0x8] sm:$0xff] %v477
      %p480 = scmp.eq.s32.totalorder %s20, 2
      // Predicated region
      $region41: #{simple_rnn_forward.1} parent=35 // pred_check
        %p481 = pneg %p480
      $region42: #{simple_rnn_forward.1} parent=35 // pred_check_branch
        %483 = sbr.rel (%p481) target = $region44
      $region43: #{simple_rnn_forward.1} parent=35 // pred_region
        %v484 = vpack.c.bf16 %v477, %v476
        %v485 = vld [vmem:[%s2] sm:$0xf]
        %v486 = vld [vmem:[%s2 + $0x4] sm:$0xf]
        %v487 = vld [vmem:[%s2 + $0x8] sm:$0xf]
        %v488 = vld [vmem:[%s2 + $0xc] sm:$0xf]
        %v489 = vld [vmem:[%s2 + $0x10] sm:$0xf]
        %v490 = vld [vmem:[%s2 + $0x14] sm:$0xf]
        %v491 = vld [vmem:[%s2 + $0x18] sm:$0xf]
        %v492 = vld [vmem:[%s2 + $0x1c] sm:$0xf]
        %v493 = vld [vmem:[%s2 + $0x20] sm:$0xf]
        %v494 = vld [vmem:[%s2 + $0x24] sm:$0xf]
        %v495 = vld [vmem:[%s2 + $0x28] sm:$0xf]
        %v496 = vld [vmem:[%s2 + $0x2c] sm:$0xf]
        %v497 = vld [vmem:[%s2 + $0x30] sm:$0xf]
        %v498 = vld [vmem:[%s2 + $0x34] sm:$0xf]
        %v499 = vld [vmem:[%s2 + $0x38] sm:$0xf]
        %v500 = vld [vmem:[%s2 + $0x3c] sm:$0xf]
        %v501 = vld [vmem:[%s3] sm:$0x1]
        %v503 = vlaneseq
        %v504 = vshrl.u32 %v503, 7
        %v505 = vsub.s32 0, %v504
        %v506 = vrot.slane %v501, %v505
        %v524 = vunpack.c.l.b16 %v485
        %v525 = vunpack.c.l.b16 %v486
        %v526 = vunpack.c.l.b16 %v487
        %v527 = vunpack.c.l.b16 %v488
        %v528 = vunpack.c.l.b16 %v489
        %v529 = vunpack.c.l.b16 %v490
        %v530 = vunpack.c.l.b16 %v491
        %v531 = vunpack.c.l.b16 %v492
        %v532 = vunpack.c.l.b16 %v493
        %v533 = vunpack.c.l.b16 %v494
        %v534 = vunpack.c.l.b16 %v495
        %v535 = vunpack.c.l.b16 %v496
        %v536 = vunpack.c.l.b16 %v497
        %v537 = vunpack.c.l.b16 %v498
        %v538 = vunpack.c.l.b16 %v499
        %v539 = vunpack.c.l.b16 %v500
        %v540 = vpack.c.b16 %v525, %v524
        %v541 = vpack.c.b16 %v527, %v526
        %v542 = vpack.c.b16 %v529, %v528
        %v543 = vpack.c.b16 %v531, %v530
        %v544 = vpack.c.b16 %v533, %v532
        %v545 = vpack.c.b16 %v535, %v534
        %v546 = vpack.c.b16 %v537, %v536
        %v547 = vpack.c.b16 %v539, %v538
        %556 = vmatprep.subr.bf16.mxu0 0
        %557 = vmatpush1.bf16.msra.mxu0 %v540
        %558 = vmatprep.subr.bf16.mxu0 0
        %559 = vmatpush1.bf16.msra.mxu0 %v541
        %560 = vmatprep.subr.bf16.mxu0 0
        %561 = vmatpush1.bf16.msra.mxu0 %v542
        %562 = vmatprep.subr.bf16.mxu0 0
        %563 = vmatpush1.bf16.msra.mxu0 %v543
        %564 = vmatprep.subr.bf16.mxu0 0
        %565 = vmatpush1.bf16.msra.mxu0 %v544
        %566 = vmatprep.subr.bf16.mxu0 0
        %567 = vmatpush1.bf16.msra.mxu0 %v545
        %568 = vmatprep.subr.bf16.mxu0 0
        %569 = vmatpush1.bf16.msra.mxu0 %v546
        %570 = vmatprep.subr.bf16.mxu0 0
        %571 = vmatpush1.bf16.msra.mxu0 %v547
        %572 = vmatprep.subr.bf16.mxu0 0
        %573 = vmatpush1.bf16.msra.mxu0 0
        %574 = vmatprep.subr.bf16.mxu0 0
        %575 = vmatpush1.bf16.msra.mxu0 0
        %576 = vmatprep.subr.bf16.mxu0 0
        %577 = vmatpush1.bf16.msra.mxu0 0
        %578 = vmatprep.subr.bf16.mxu0 0
        %579 = vmatpush1.bf16.msra.mxu0 0
        %580 = vmatprep.subr.bf16.mxu0 0
        %581 = vmatpush1.bf16.msra.mxu0 0
        %582 = vmatprep.subr.bf16.mxu0 0
        %583 = vmatpush1.bf16.msra.mxu0 0
        %584 = vmatprep.subr.bf16.mxu0 0
        %585 = vmatpush1.bf16.msra.mxu0 0
        %586 = vmatprep.subr.bf16.mxu0 0
        %587 = vmatpush1.bf16.msra.mxu0 0
        %588 = vmatprep.mubr.bf16.mxu0 0
        %589 = vmatmul.mubr.bf16.gmra.mrb[0].mxu0 %v484
        %v590 = vpop.f32.mrb[0].mxu0
        %v591 = vadd.f32 %v506, %v590
        %v592 = vpop.f32.mrb[0].mxu0
        %v593 = vpop.f32.mrb[0].mxu0
        %v594 = vadd.f32 %v506, %v593
        %v595 = vpop.f32.mrb[0].mxu0
        %596 = vdwg.mxu0
        %597 = vst [vmem:[%s230] sm:$0xff] %v591
        %598 = vst [vmem:[%s230 + $0x8] sm:$0xff] %v594
      $region44: #{simple_rnn_forward.1} parent=35 // pred_fallthru
        _
      %s599 = smul.u32 2, %s19
      %p600 = scmp.lt.s32.totalorder %s599, 1
      %s601 = scalar_select %p600, %s599, 1
      %s602 = smul.addr %s601, 8
      %s603 = scalar_lea.vmem %s4, %s602
      // Predicated region
      $region45: #{simple_rnn_forward.1} parent=35 // pred_check
        %p604 = pneg %p136
      $region46: #{simple_rnn_forward.1} parent=35 // pred_check_branch
        %606 = sbr.rel (%p604) target = $region48
      $region47: #{simple_rnn_forward.1} parent=35 // pred_region
        %s607 = smul.u32 2, %s19
      $region48: #{simple_rnn_forward.1} parent=35 // pred_fallthru
        _
      // Predicated region
      $region49: #{simple_rnn_forward.1} parent=35 // pred_check
        %p608 = pneg %p136
      $region50: #{simple_rnn_forward.1} parent=35 // pred_check_branch
        %610 = sbr.rel (%p608) target = $region52
      $region51: #{simple_rnn_forward.1} parent=35 // pred_region
        %s611 = smul.u32 2, %s19
        %p612 = scmp.lt.s32.totalorder %s611, 1
        %s613 = scalar_select %p612, %s611, 1
        %s614 = smul.addr %s613, 8
        %s615 = scalar_lea.vmem %s4, %s614
      $region52: #{simple_rnn_forward.1} parent=35 // pred_fallthru
        _
    $region36: #{simple_rnn_forward.1} parent=5 // pred_fallthru
      _
    %p616 = scmp.le.s32.totalorder 2, %s10
    // Predicated region
    $region53: #{simple_rnn_forward.1} parent=5 // pred_check
      %p617 = pneg %p616
    $region54: #{simple_rnn_forward.1} parent=5 // pred_check_branch
      %619 = sbr.rel (%p617) target = $region56
    $region55: #{simple_rnn_forward.1} parent=5 // pred_region
      %s620 = ssub.s32 %s10, 2
    $region56: #{simple_rnn_forward.1} parent=5 // pred_fallthru
      _
  $region6: #{simple_rnn_forward.1} parent=0 // loop_footer
    %s14 = sadd.s32 1, %s10
  $region7: #{simple_rnn_forward.1} parent=0 // loop_footer_branch
    %9 = sbr.rel target = $region3
  $region8: #{simple_rnn_forward.1} parent=0 // loop_exit
    _

</llo_original>
